<compile_context>
chip_gen: v5e
topology: v5e:2x2
jax: 0.10.0
libtpu: 0.0.40
codegen_flags: <defaults>
</compile_context>

<pallas_src>
import functools

import jax
import jax.numpy as jnp
from jax.experimental import pallas as pl
from jax.experimental.pallas import tpu as pltpu

_MIB = 1024 * 1024


def _vmem_capacity_bytes():
    """Physical VMEM per TensorCore (128 MiB on v5e/v6e, 64 MiB on v7x)."""
    try:
        return int(pltpu.get_tpu_info().vmem_capacity_bytes)
    except Exception:
        return 64 * _MIB  # safe lower bound (v7x per-core VMEM)


def att_module_ref(x, w1, w2):
    """Pure-JAX reference matching the PyTorch AttModule forward (f32 math)."""
    xf = x.astype(jnp.float32)
    y = jnp.mean(xf, axis=(2, 3, 4))                        # (B, C)
    h = jnp.maximum(y @ w1.astype(jnp.float32).T, 0.0)      # (B, MID)
    scale = jax.nn.sigmoid(h @ w2.astype(jnp.float32).T)    # (B, C)
    return x * scale.astype(x.dtype)[:, :, None, None, None]


# ---------------------------------------------------------------------------
# Fused single-pass kernel: pooled mean + tiny FC + sigmoid + scale.
# ---------------------------------------------------------------------------
def _att_fused_kernel(x_ref, w1t_ref, w2_ref, o_ref, *, inv_spatial):
    """Processes Bt batch elements per grid step.

    x_ref  : (Bt, C, S)  activations in their native dtype, S = D*H*W (lanes)
    w1t_ref: (C, MID)    = torch fc1.weight.T   (fc1.weight: (MID, C))
    w2_ref : (C, MID)    = torch fc2.weight     (fc2.weight: (C, MID))
    o_ref  : (Bt, C, S)  output, same dtype as x
    """
    x = x_ref[...]                                                    # (Bt, C, S)
    # Squeeze: per-channel spatial mean, accumulated in f32 (lane reduce).
    y = jnp.sum(x.astype(jnp.float32), axis=2, keepdims=True) * inv_spatial
    # Excite: tiny FCs on the VPU via broadcast + reduce (no padded MXU tiles).
    w1t = w1t_ref[...].astype(jnp.float32)                            # (C, MID)
    w2 = w2_ref[...].astype(jnp.float32)                              # (C, MID)
    h = jnp.sum(y * w1t[None, :, :], axis=1, keepdims=True)           # (Bt, 1, MID)
    h = jnp.maximum(h, 0.0)                                           # ReLU
    s = jnp.sum(h * w2[None, :, :], axis=2, keepdims=True)            # (Bt, C, 1)
    scale = jax.nn.sigmoid(s)                                         # (Bt, C, 1)
    # Scale: broadcast the per-channel gate over spatial lanes, native dtype.
    o_ref[...] = (x * scale.astype(x.dtype)).astype(o_ref.dtype)


# ---------------------------------------------------------------------------
# Tiled two-pass fallback kernels (per-batch slab too large for VMEM).
# ---------------------------------------------------------------------------
def _spatial_sum_kernel(x_ref, o_ref):
    """Accumulate per-channel spatial sums over S-tiles (f32 accumulator)."""
    @pl.when(pl.program_id(1) == 0)
    def _():
        o_ref[...] = jnp.zeros_like(o_ref)
    o_ref[...] += jnp.sum(x_ref[...].astype(jnp.float32), axis=2, keepdims=True)


def _apply_scale_kernel(x_ref, s_ref, o_ref):
    """out = x * per-channel gate, streamed over S-tiles."""
    o_ref[...] = (x_ref[...] * s_ref[...].astype(x_ref.dtype)).astype(o_ref.dtype)


# ---------------------------------------------------------------------------
# Wrapper
# ---------------------------------------------------------------------------
def att_module_pallas(x, w1, w2, *, vmem_budget_bytes=None, donate_x=False):
    """AttModule forward.

    x : (B, C, D, H, W) activations (output keeps this dtype)
    w1: (MID, C) = fc1.weight (no bias);  w2: (C, MID) = fc2.weight (no bias)
    donate_x: alias the input slab to the output (set only if x is donated at
              the jit boundary; halves peak HBM footprint).
    """
    B, C, D, H, W = x.shape
    MID = w1.shape[0]
    assert w1.shape == (MID, C) and w2.shape == (C, MID)
    S = D * H * W
    dsize = jnp.dtype(x.dtype).itemsize

    xr = x.reshape(B, C, S)                 # free contiguous collapse
    w1t = jnp.transpose(w1)                 # (C, MID); kernel upcasts to f32

    vmem_cap = _vmem_capacity_bytes()
    # Leave ~half of physical VMEM for Mosaic internals / regalloc headroom:
    # ~64 MiB of buffers on v5e/v6e, ~32 MiB on v7x.
    budget = vmem_budget_bytes if vmem_budget_bytes is not None else vmem_cap // 2

    # Conservative per-element VMEM cost of the fused kernel: double-buffered
    # input + output in the native dtype plus one f32 temp for the f32-
    # accumulated spatial reduction.
    per_elem = 4 * dsize + 4
    cost_per_batch = C * S * per_elem
    alias = {0: 0} if donate_x else {}

    if cost_per_batch <= budget:
        # ---------------- Fused single-pass path ---------------------------
        # Batch several elements per grid step so DMAs exceed ~1 MiB, but keep
        # at least min(B, 4) grid steps so v7x's two TensorCores both get
        # pipelined work.
        # TODO(synk): for B == 1 a spatially-tiled variant would let both v7x
        # cores participate; a single grid step is accepted here.
        min_steps = min(B, 4)
        bt_cap = min(budget // cost_per_batch, max(1, B // min_steps))
        bt = 1
        for d in range(1, int(bt_cap) + 1):
            if B % d == 0:
                bt = d
        needed = bt * cost_per_batch + 2 * C * MID * 4 + 4 * _MIB
        vmem_limit = int(min(vmem_cap, max(needed, 32 * _MIB)))

        out = pl.pallas_call(
            functools.partial(_att_fused_kernel, inv_spatial=1.0 / S),
            out_shape=jax.ShapeDtypeStruct((B, C, S), x.dtype),
            grid=(B // bt,),
            in_specs=[
                pl.BlockSpec((bt, C, S), lambda b: (b, 0, 0)),
                pl.BlockSpec((C, MID), lambda b: (0, 0)),
                pl.BlockSpec((C, MID), lambda b: (0, 0)),
            ],
            out_specs=pl.BlockSpec((bt, C, S), lambda b: (b, 0, 0)),
            input_output_aliases=alias,
            compiler_params=pltpu.CompilerParams(
                dimension_semantics=("parallel",),
                vmem_limit_bytes=vmem_limit),
        )(xr, w1t, w2)
        return out.reshape(B, C, D, H, W)

    # ---------------- Tiled two-pass fallback (large slabs) ---------------
    # Largest lane-aligned (multiple of 128) spatial tile dividing S that
    # fits the VMEM budget.
    ts_cap = int(budget // (C * per_elem))
    ts = 0
    for t in range(128, min(S, ts_cap) + 1, 128):
        if S % t == 0:
            ts = t
    if ts == 0:
        # TODO(synk): no lane-aligned spatial tile divides S within the VMEM
        # budget (odd spatial volume / very large C); plain-XLA fallback.
        return att_module_ref(x, w1, w2)

    ns = S // ts
    vmem_limit = int(min(vmem_cap, max(C * ts * per_elem + 4 * _MIB, 32 * _MIB)))

    # Pass 1: per-(batch, channel) spatial sums, f32 accumulator resident
    # across the (last, "arbitrary") reduction grid axis.
    sums = pl.pallas_call(
        _spatial_sum_kernel,
        out_shape=jax.ShapeDtypeStruct((B, C, 1), jnp.float32),
        grid=(B, ns),
        in_specs=[pl.BlockSpec((1, C, ts), lambda b, s: (b, 0, s))],
        out_specs=pl.BlockSpec((1, C, 1), lambda b, s: (b, 0, 0)),
        compiler_params=pltpu.CompilerParams(
            dimension_semantics=("parallel", "arbitrary"),
            vmem_limit_bytes=vmem_limit),
    )(xr)

    # Tiny squeeze-excite FC on (B, C): negligible work, plain XLA.
    mean = sums[:, :, 0] * (1.0 / S)
    h = jnp.maximum(mean @ w1.astype(jnp.float32).T, 0.0)
    scale = jax.nn.sigmoid(h @ w2.astype(jnp.float32).T)[:, :, None]  # (B, C, 1)

    # Pass 2: stream x again and apply the per-channel gate.
    out = pl.pallas_call(
        _apply_scale_kernel,
        out_shape=jax.ShapeDtypeStruct((B, C, S), x.dtype),
        grid=(B, ns),
        in_specs=[
            pl.BlockSpec((1, C, ts), lambda b, s: (b, 0, s)),
            pl.BlockSpec((1, C, 1), lambda b, s: (b, 0, 0)),
        ],
        out_specs=pl.BlockSpec((1, C, ts), lambda b, s: (b, 0, s)),
        input_output_aliases=alias,
        compiler_params=pltpu.CompilerParams(
            dimension_semantics=("parallel", "parallel"),
            vmem_limit_bytes=vmem_limit),
    )(xr, scale)
    return out.reshape(B, C, D, H, W)


if __name__ == "__main__":
    key = jax.random.PRNGKey(0)
    kx, k1, k2 = jax.random.split(key, 3)

    B, C, MID = 2, 16, 8
    D = H = W = 16
    x = jax.random.normal(kx, (B, C, D, H, W), jnp.float32)
    w1 = jax.random.normal(k1, (MID, C), jnp.float32) * (1.0 / C) ** 0.5
    w2 = jax.random.normal(k2, (C, MID), jnp.float32) * (1.0 / MID) ** 0.5

    fwd = jax.jit(att_module_pallas)
    ref = att_module_ref(x, w1, w2)

    # Fused single-pass path, f32.
    out = jax.block_until_ready(fwd(x, w1, w2))
    assert out.shape == x.shape and out.dtype == x.dtype, (out.shape, out.dtype)
    assert bool(jnp.all(jnp.isfinite(out)))
    assert bool(jnp.allclose(out, ref, atol=1e-4, rtol=1e-4)), (
        float(jnp.max(jnp.abs(out - ref))))

    # Fused single-pass path, native bf16 (no f32 upcast in the wrapper).
    xb, w1b, w2b = (a.astype(jnp.bfloat16) for a in (x, w1, w2))
    outb = jax.block_until_ready(fwd(xb, w1b, w2b))
    refb = att_module_ref(xb, w1b, w2b).astype(jnp.float32)
    assert outb.dtype == jnp.bfloat16, outb.dtype
    assert bool(jnp.allclose(outb.astype(jnp.float32), refb, atol=3e-2, rtol=3e-2)), (
        float(jnp.max(jnp.abs(outb.astype(jnp.float32) - refb))))

    # Tiled two-pass fallback (forced by shrinking the VMEM budget).
    fwd_tiled = jax.jit(functools.partial(att_module_pallas,
                                          vmem_budget_bytes=256 * 1024))
    outt = jax.block_until_ready(fwd_tiled(x, w1, w2))
    assert bool(jnp.allclose(outt, ref, atol=1e-4, rtol=1e-4)), (
        float(jnp.max(jnp.abs(outt - ref))))

    print("KERNEL_OK")
</pallas_src>

<mosaic_0001>
module attributes {stable_mosaic.version = 11 : i64} {
  func.func @_att_fused_kernel(%arg0: i32, %arg1: memref<1x16x4096xf32, #tpu.memory_space<vmem>>, %arg2: memref<16x8xf32, #tpu.memory_space<vmem>>, %arg3: memref<16x8xf32, #tpu.memory_space<vmem>>, %arg4: memref<1x16x4096xf32, #tpu.memory_space<vmem>>) attributes {dimension_semantics = [#tpu.dimension_semantics<parallel>], iteration_bounds = array<i64: 2>, scalar_prefetch = 0 : i64, scratch_operands = 0 : i64, tpu.core_type = #tpu.core_type<tc>, window_params = [{transform_indices = @transform_0, window_bounds = array<i64: 1, 16, 4096>}, {pipeline_mode = #tpu.pipeline_mode<synchronous>, transform_indices = @transform_1, window_bounds = array<i64: 16, 8>}, {pipeline_mode = #tpu.pipeline_mode<synchronous>, transform_indices = @transform_2, window_bounds = array<i64: 16, 8>}, {transform_indices = @transform_3, window_bounds = array<i64: 1, 16, 4096>}]} {
    %c0 = arith.constant 0 : index
    %c0_0 = arith.constant 0 : index
    %c0_1 = arith.constant 0 : index
    %0 = vector.load %arg1[%c0, %c0_0, %c0_1] : memref<1x16x4096xf32, #tpu.memory_space<vmem>>, vector<1x16x4096xf32>
    %cst = arith.constant dense<0.000000e+00> : vector<1x16xf32>
    %1 = vector.multi_reduction <add>, %0, %cst [2] : vector<1x16x4096xf32> to vector<1x16xf32>
    %2 = vector.shape_cast %1 : vector<1x16xf32> to vector<1x16x1xf32>
    %cst_2 = arith.constant 2.44140625E-4 : f32
    %3 = vector.broadcast %cst_2 : f32 to vector<1x16x1xf32>
    %4 = arith.mulf %2, %3 : vector<1x16x1xf32>
    %c0_3 = arith.constant 0 : index
    %c0_4 = arith.constant 0 : index
    %5 = vector.load %arg2[%c0_3, %c0_4] : memref<16x8xf32, #tpu.memory_space<vmem>>, vector<16x8xf32>
    %c0_5 = arith.constant 0 : index
    %c0_6 = arith.constant 0 : index
    %6 = vector.load %arg3[%c0_5, %c0_6] : memref<16x8xf32, #tpu.memory_space<vmem>>, vector<16x8xf32>
    %7 = vector.shape_cast %5 : vector<16x8xf32> to vector<1x16x8xf32>
    %8 = vector.broadcast %4 : vector<1x16x1xf32> to vector<1x16x8xf32>
    %9 = arith.mulf %8, %7 : vector<1x16x8xf32>
    %cst_7 = arith.constant dense<0.000000e+00> : vector<1x8xf32>
    %10 = vector.multi_reduction <add>, %9, %cst_7 [1] : vector<1x16x8xf32> to vector<1x8xf32>
    %11 = vector.shape_cast %10 : vector<1x8xf32> to vector<1x1x8xf32>
    %cst_8 = arith.constant 0.000000e+00 : f32
    %12 = vector.broadcast %cst_8 : f32 to vector<1x1x8xf32>
    %13 = arith.maximumf %11, %12 : vector<1x1x8xf32>
    %14 = vector.shape_cast %6 : vector<16x8xf32> to vector<1x16x8xf32>
    %15 = vector.broadcast %13 : vector<1x1x8xf32> to vector<1x16x8xf32>
    %16 = arith.mulf %15, %14 : vector<1x16x8xf32>
    %cst_9 = arith.constant dense<0.000000e+00> : vector<1x16xf32>
    %17 = vector.multi_reduction <add>, %16, %cst_9 [2] : vector<1x16x8xf32> to vector<1x16xf32>
    %18 = vector.shape_cast %17 : vector<1x16xf32> to vector<1x16x1xf32>
    %19 = arith.negf %18 : vector<1x16x1xf32>
    %20 = math.exp %19 : vector<1x16x1xf32>
    %cst_10 = arith.constant 1.000000e+00 : f32
    %21 = vector.broadcast %cst_10 : f32 to vector<1x16x1xf32>
    %22 = arith.addf %21, %20 : vector<1x16x1xf32>
    %23 = arith.divf %21, %22 : vector<1x16x1xf32>
    %24 = vector.broadcast %23 : vector<1x16x1xf32> to vector<1x16x4096xf32>
    %25 = arith.mulf %0, %24 : vector<1x16x4096xf32>
    %c0_11 = arith.constant 0 : index
    %c0_12 = arith.constant 0 : index
    %c0_13 = arith.constant 0 : index
    %26 = vector.load %arg4[%c0_11, %c0_12, %c0_13] : memref<1x16x4096xf32, #tpu.memory_space<vmem>>, vector<1x16x4096xf32>
    tpu.vector_store %arg4[%c0_11, %c0_12, %c0_13], %25 {strides = array<i32>} : memref<1x16x4096xf32, #tpu.memory_space<vmem>>, vector<1x16x4096xf32>,
    return
  }
  func.func @transform_0(%arg0: i32) -> (i32, i32, i32) {
    %c0_i32 = arith.constant 0 : i32
    %c0_i32_0 = arith.constant 0 : i32
    %c0_i32_1 = arith.constant 0 : i32
    return %arg0, %c0_i32, %c0_i32_0 : i32, i32, i32
  }
  func.func @transform_1(%arg0: i32) -> (i32, i32) {
    %c0_i32 = arith.constant 0 : i32
    %c0_i32_0 = arith.constant 0 : i32
    %c0_i32_1 = arith.constant 0 : i32
    return %c0_i32, %c0_i32_0 : i32, i32
  }
  func.func @transform_2(%arg0: i32) -> (i32, i32) {
    %c0_i32 = arith.constant 0 : i32
    %c0_i32_0 = arith.constant 0 : i32
    %c0_i32_1 = arith.constant 0 : i32
    return %c0_i32, %c0_i32_0 : i32, i32
  }
  func.func @transform_3(%arg0: i32) -> (i32, i32, i32) {
    %c0_i32 = arith.constant 0 : i32
    %c0_i32_0 = arith.constant 0 : i32
    %c0_i32_1 = arith.constant 0 : i32
    return %arg0, %c0_i32, %c0_i32_0 : i32, i32, i32
  }
}

</mosaic_0001>

<llo_original>
// kernel: att_module_pallas.1
$region0: #{att_module_pallas.1}
  #allocation0 [shape = 'u32[]', space=smem, size = 0x4, offset = 0x4, fixed_abs, tag = 'smem constant byte address 0x4 - core index']
  #allocation1 [shape = 'u32[72,128]{1,0:T(1,128)}', space=vmem, size = 0x9000, scoped, tag = 'internal scratch']
  %s0 = inlined_call_operand.vmem [shape: f32[2,16,4096], index: 0, kind: input, shape index: {}]
  %s1 = inlined_call_operand.vmem [shape: f32[16,8], index: 1, kind: input, shape index: {}]
  %s2 = inlined_call_operand.vmem [shape: f32[16,8], index: 2, kind: input, shape index: {}]
  %s3 = inlined_call_operand.vmem [shape: f32[2,16,4096], index: 3, kind: output, shape index: {}]
  %s4 = sld [smem:[#allocation0]]
  $region45: #{att_module_pallas.1} parent=0
    _
  %s6 = ssub.s32 1, %s4
  %s7 = scalar_select 0, %s6, %s4
  loop: start=0, step=1, limit=4
  $region2: #{att_module_pallas.1} parent=0 // loop_pre_header
    _
  $region3: #{att_module_pallas.1} parent=0 // loop_header
    %s9 = sphi 0, %s13
    %p10 = scmp.ge.s32.totalorder %s9, 4
    %s19 = sphi 0, %s21
    %s22 = sphi 0, %s19
    %s23 = sphi 0, %s22
    %s39 = sphi 0, %s23
    %s43 = sphi 0, %s43
    %s45 = sphi 0, %s43
    %s46 = sphi 0, %s45
    %s60 = sphi 0, %s46
    %s64 = sphi 0, %s64
    %s66 = sphi 0, %s64
    %s67 = sphi 0, %s66
    %s81 = sphi 0, %s67
    %s87 = sphi 0, %s89
    %s90 = sphi 0, %s87
    %s91 = sphi 0, %s90
    %s107 = sphi 0, %s91
  $region4: #{att_module_pallas.1} parent=0 // loop_header_branch
    %12 = sbr.rel (%p10) target = $region8
  $region5: #{att_module_pallas.1} parent=0 // loop_body
    %s14 = ssub.s32 %s9, 1
    %s15 = ssub.s32 %s9, 2
    %s16 = sadd.s32 %s9, 1
    %s17 = ssub.s32 %s9, %s16
    %p18 = scmp.eq.s32.totalorder %s17, 0
    %s20 = sadd.s32 %s19, 1
    %s21 = scalar_select %p18, %s19, %s20
    %p24 = pneg %p18
    %p25 = scmp.eq.s32.totalorder %s9, 1
    %p26 = por %p24, %p25
    %p27 = scmp.ne.s32.totalorder %s19, %s22
    %p28 = scmp.eq.s32.totalorder %s9, 0
    %p29 = por %p27, %p28
    %p30 = scmp.ne.s32.totalorder %s19, %s22
    %p31 = scmp.eq.s32.totalorder %s14, 1
    %p32 = por %p30, %p31
    %p33 = scmp.ne.s32.totalorder %s22, %s23
    %p34 = scmp.eq.s32.totalorder %s14, 0
    %p35 = por %p33, %p34
    %p36 = scmp.ne.s32.totalorder %s22, %s23
    %p37 = scmp.eq.s32.totalorder %s15, 1
    %p38 = por %p36, %p37
    %p40 = scmp.ne.s32.totalorder %s23, %s39
    %p41 = scmp.eq.s32.totalorder %s15, 0
    %p42 = por %p40, %p41
    %s44 = sadd.s32 %s43, 1
    %p47 = scmp.eq.s32.totalorder %s9, 1
    %p48 = scmp.ne.s32.totalorder %s43, %s45
    %p49 = scmp.eq.s32.totalorder %s9, 0
    %p50 = por %p48, %p49
    %p51 = scmp.ne.s32.totalorder %s43, %s45
    %p52 = scmp.eq.s32.totalorder %s14, 1
    %p53 = por %p51, %p52
    %p54 = scmp.ne.s32.totalorder %s45, %s46
    %p55 = scmp.eq.s32.totalorder %s14, 0
    %p56 = por %p54, %p55
    %p57 = scmp.ne.s32.totalorder %s45, %s46
    %p58 = scmp.eq.s32.totalorder %s15, 1
    %p59 = por %p57, %p58
    %p61 = scmp.ne.s32.totalorder %s46, %s60
    %p62 = scmp.eq.s32.totalorder %s15, 0
    %p63 = por %p61, %p62
    %s65 = sadd.s32 %s64, 1
    %p68 = scmp.eq.s32.totalorder %s9, 1
    %p69 = scmp.ne.s32.totalorder %s64, %s66
    %p70 = scmp.eq.s32.totalorder %s9, 0
    %p71 = por %p69, %p70
    %p72 = scmp.ne.s32.totalorder %s64, %s66
    %p73 = scmp.eq.s32.totalorder %s14, 1
    %p74 = por %p72, %p73
    %p75 = scmp.ne.s32.totalorder %s66, %s67
    %p76 = scmp.eq.s32.totalorder %s14, 0
    %p77 = por %p75, %p76
    %p78 = scmp.ne.s32.totalorder %s66, %s67
    %p79 = scmp.eq.s32.totalorder %s15, 1
    %p80 = por %p78, %p79
    %p82 = scmp.ne.s32.totalorder %s67, %s81
    %p83 = scmp.eq.s32.totalorder %s15, 0
    %p84 = por %p82, %p83
    %s85 = ssub.s32 %s9, %s16
    %p86 = scmp.eq.s32.totalorder %s85, 0
    %s88 = sadd.s32 %s87, 1
    %s89 = scalar_select %p86, %s87, %s88
    %p92 = pneg %p86
    %p93 = scmp.eq.s32.totalorder %s9, 1
    %p94 = por %p92, %p93
    %p95 = scmp.ne.s32.totalorder %s87, %s90
    %p96 = scmp.eq.s32.totalorder %s9, 0
    %p97 = por %p95, %p96
    %p98 = scmp.ne.s32.totalorder %s87, %s90
    %p99 = scmp.eq.s32.totalorder %s14, 1
    %p100 = por %p98, %p99
    %p101 = scmp.ne.s32.totalorder %s90, %s91
    %p102 = scmp.eq.s32.totalorder %s14, 0
    %p103 = por %p101, %p102
    %p104 = scmp.ne.s32.totalorder %s90, %s91
    %p105 = scmp.eq.s32.totalorder %s15, 1
    %p106 = por %p104, %p105
    %p108 = scmp.ne.s32.totalorder %s91, %s107
    %p109 = scmp.eq.s32.totalorder %s15, 0
    %p110 = por %p108, %p109
    %p111 = scmp.le.s32.totalorder 1, %s9
    %p112 = scmp.lt.s32.totalorder %s9, 3
    %p113 = pnand %p111, %p112
    %p114 = pneg %p113
    // Predicated region
    $region9: #{att_module_pallas.1} parent=5 // pred_check
      _
    $region10: #{att_module_pallas.1} parent=5 // pred_check_branch
      %116 = sbr.rel (%p113) target = $region12
    $region11: #{att_module_pallas.1} parent=5 // pred_region
      %s117 = ssub.s32 %s9, 1
      // Predicated region
      $region13: #{att_module_pallas.1} parent=11 // pred_check
        %p118 = pneg %p56
      $region14: #{att_module_pallas.1} parent=11 // pred_check_branch
        %120 = sbr.rel (%p118) target = $region16
      $region15: #{att_module_pallas.1} parent=11 // pred_region
        _
      $region16: #{att_module_pallas.1} parent=11 // pred_fallthru
        _
      // Predicated region
      $region17: #{att_module_pallas.1} parent=11 // pred_check
        %p121 = pneg %p77
      $region18: #{att_module_pallas.1} parent=11 // pred_check_branch
        %123 = sbr.rel (%p121) target = $region20
      $region19: #{att_module_pallas.1} parent=11 // pred_region
        _
      $region20: #{att_module_pallas.1} parent=11 // pred_fallthru
        _
    $region12: #{att_module_pallas.1} parent=5 // pred_fallthru
      _
    %p124 = scmp.lt.s32.totalorder %s9, 2
    // Predicated region
    $region21: #{att_module_pallas.1} parent=5 // pred_check
      %p125 = pneg %p124
    $region22: #{att_module_pallas.1} parent=5 // pred_check_branch
      %127 = sbr.rel (%p125) target = $region24
    $region23: #{att_module_pallas.1} parent=5 // pred_region
      // Predicated region
      $region25: #{att_module_pallas.1} parent=23 // pred_check
        %p128 = pneg %p29
      $region26: #{att_module_pallas.1} parent=23 // pred_check_branch
        %130 = sbr.rel (%p128) target = $region28
      $region27: #{att_module_pallas.1} parent=23 // pred_region
        %p131 = scmp.lt.s32.totalorder %s9, 1
        %s132 = scalar_select %p131, %s9, 1
        %s133 = smul.addr %s132, 64
        %s134 = smul.addr %s133, 8
        %s135 = scalar_lea.vmem %s0, %s134
      $region28: #{att_module_pallas.1} parent=23 // pred_fallthru
        _
    $region24: #{att_module_pallas.1} parent=5 // pred_fallthru
      _
    %p136 = scmp.le.s32.totalorder 1, %s9
    %p137 = scmp.lt.s32.totalorder %s9, 3
    %p138 = pnand %p136, %p137
    %p139 = pneg %p138
    // Predicated region
    $region29: #{att_module_pallas.1} parent=5 // pred_check
      _
    $region30: #{att_module_pallas.1} parent=5 // pred_check_branch
      %141 = sbr.rel (%p138) target = $region32
    $region31: #{att_module_pallas.1} parent=5 // pred_region
      %s142 = ssub.s32 %s9, 1
      %p143 = scmp.lt.s32.totalorder %s14, 1
      %s144 = scalar_select %p143, %s14, 1
      %s145 = smul.addr %s144, 64
      %s146 = smul.addr %s145, 8
      %s147 = scalar_lea.vmem %s0, %s146
      %p148 = pneg %p35
      %p149 = pneg %p32
      %p150 = pneg %p56
      %p151 = pneg %p53
      %p152 = pneg %p77
      %p153 = pneg %p74
      %p154 = pneg %p103
      %p155 = pneg %p100
      %p156 = scmp.lt.s32.totalorder %s14, 1
      %s157 = scalar_select %p156, %s14, 1
      %s158 = smul.addr %s157, 64
      %s159 = smul.addr %s158, 8
      %s160 = scalar_lea.vmem %s3, %s159
      %p161 = scmp.lt.s32.totalorder %s14, 1
      %s162 = scalar_select %p161, %s14, 1
      %s163 = smul.addr %s162, 64
      %s164 = smul.addr %s163, 8
      %s165 = scalar_lea.vmem %s0, %s164
      %p166 = scmp.lt.s32.totalorder %s14, 1
      %s167 = scalar_select %p166, %s14, 1
      %s168 = smul.addr %s167, 64
      %s169 = smul.addr %s168, 8
      %s170 = scalar_lea.vmem %s3, %s169
      %v171 = vld [vmem:[%s165] sm:$0xff]
      %v172 = vld [vmem:[%s165 + $0x8] sm:$0xff]
      %v173 = vld [vmem:[%s165 + $0x10] sm:$0xff]
      %v174 = vld [vmem:[%s165 + $0x18] sm:$0xff]
      %v175 = vld [vmem:[%s165 + $0x20] sm:$0xff]
      %v176 = vld [vmem:[%s165 + $0x28] sm:$0xff]
      %v177 = vld [vmem:[%s165 + $0x30] sm:$0xff]
      %v178 = vld [vmem:[%s165 + $0x38] sm:$0xff]
      %v179 = vld [vmem:[%s165 + $0x40] sm:$0xff]
      %v180 = vld [vmem:[%s165 + $0x48] sm:$0xff]
      %v181 = vld [vmem:[%s165 + $0x50] sm:$0xff]
      %v182 = vld [vmem:[%s165 + $0x58] sm:$0xff]
      %v183 = vld [vmem:[%s165 + $0x60] sm:$0xff]
      %v184 = vld [vmem:[%s165 + $0x68] sm:$0xff]
      %v185 = vld [vmem:[%s165 + $0x70] sm:$0xff]
      %v186 = vld [vmem:[%s165 + $0x78] sm:$0xff]
      %v187 = vld [vmem:[%s165 + $0x80] sm:$0xff]
      %v188 = vld [vmem:[%s165 + $0x88] sm:$0xff]
      %v189 = vld [vmem:[%s165 + $0x90] sm:$0xff]
      %v190 = vld [vmem:[%s165 + $0x98] sm:$0xff]
      %v191 = vld [vmem:[%s165 + $0xa0] sm:$0xff]
      %v192 = vld [vmem:[%s165 + $0xa8] sm:$0xff]
      %v193 = vld [vmem:[%s165 + $0xb0] sm:$0xff]
      %v194 = vld [vmem:[%s165 + $0xb8] sm:$0xff]
      %v195 = vld [vmem:[%s165 + $0xc0] sm:$0xff]
      %v196 = vld [vmem:[%s165 + $0xc8] sm:$0xff]
      %v197 = vld [vmem:[%s165 + $0xd0] sm:$0xff]
      %v198 = vld [vmem:[%s165 + $0xd8] sm:$0xff]
      %v199 = vld [vmem:[%s165 + $0xe0] sm:$0xff]
      %v200 = vld [vmem:[%s165 + $0xe8] sm:$0xff]
      %v201 = vld [vmem:[%s165 + $0xf0] sm:$0xff]
      %v202 = vld [vmem:[%s165 + $0xf8] sm:$0xff]
      %v203 = vld [vmem:[%s165 + $0x100] sm:$0xff]
      %v204 = vld [vmem:[%s165 + $0x108] sm:$0xff]
      %v205 = vld [vmem:[%s165 + $0x110] sm:$0xff]
      %v206 = vld [vmem:[%s165 + $0x118] sm:$0xff]
      %v207 = vld [vmem:[%s165 + $0x120] sm:$0xff]
      %v208 = vld [vmem:[%s165 + $0x128] sm:$0xff]
      %v209 = vld [vmem:[%s165 + $0x130] sm:$0xff]
      %v210 = vld [vmem:[%s165 + $0x138] sm:$0xff]
      %v211 = vld [vmem:[%s165 + $0x140] sm:$0xff]
      %v212 = vld [vmem:[%s165 + $0x148] sm:$0xff]
      %v213 = vld [vmem:[%s165 + $0x150] sm:$0xff]
      %v214 = vld [vmem:[%s165 + $0x158] sm:$0xff]
      %v215 = vld [vmem:[%s165 + $0x160] sm:$0xff]
      %v216 = vld [vmem:[%s165 + $0x168] sm:$0xff]
      %v217 = vld [vmem:[%s165 + $0x170] sm:$0xff]
      %v218 = vld [vmem:[%s165 + $0x178] sm:$0xff]
      %v219 = vld [vmem:[%s165 + $0x180] sm:$0xff]
      %v220 = vld [vmem:[%s165 + $0x188] sm:$0xff]
      %v221 = vld [vmem:[%s165 + $0x190] sm:$0xff]
      %v222 = vld [vmem:[%s165 + $0x198] sm:$0xff]
      %v223 = vld [vmem:[%s165 + $0x1a0] sm:$0xff]
      %v224 = vld [vmem:[%s165 + $0x1a8] sm:$0xff]
      %v225 = vld [vmem:[%s165 + $0x1b0] sm:$0xff]
      %v226 = vld [vmem:[%s165 + $0x1b8] sm:$0xff]
      %v227 = vld [vmem:[%s165 + $0x1c0] sm:$0xff]
      %v228 = vld [vmem:[%s165 + $0x1c8] sm:$0xff]
      %v229 = vld [vmem:[%s165 + $0x1d0] sm:$0xff]
      %v230 = vld [vmem:[%s165 + $0x1d8] sm:$0xff]
      %v231 = vld [vmem:[%s165 + $0x1e0] sm:$0xff]
      %v232 = vld [vmem:[%s165 + $0x1e8] sm:$0xff]
      %v233 = vld [vmem:[%s165 + $0x1f0] sm:$0xff]
      %v234 = vld [vmem:[%s165 + $0x1f8] sm:$0xff]
      %v235 = vadd.f32 %v171, %v172
      %v236 = vadd.f32 %v235, %v173
      %v237 = vadd.f32 %v236, %v174
      %v238 = vadd.f32 %v237, %v175
      %v239 = vadd.f32 %v238, %v176
      %v240 = vadd.f32 %v239, %v177
      %v241 = vadd.f32 %v240, %v178
      %v242 = vadd.f32 %v241, %v179
      %v243 = vadd.f32 %v242, %v180
      %v244 = vadd.f32 %v243, %v181
      %v245 = vadd.f32 %v244, %v182
      %v246 = vadd.f32 %v245, %v183
      %v247 = vadd.f32 %v246, %v184
      %v248 = vadd.f32 %v247, %v185
      %v249 = vadd.f32 %v248, %v186
      %v250 = vadd.f32 %v249, %v187
      %v251 = vadd.f32 %v250, %v188
      %v252 = vadd.f32 %v251, %v189
      %v253 = vadd.f32 %v252, %v190
      %v254 = vadd.f32 %v253, %v191
      %v255 = vadd.f32 %v254, %v192
      %v256 = vadd.f32 %v255, %v193
      %v257 = vadd.f32 %v256, %v194
      %v258 = vadd.f32 %v257, %v195
      %v259 = vadd.f32 %v258, %v196
      %v260 = vadd.f32 %v259, %v197
      %v261 = vadd.f32 %v260, %v198
      %v262 = vadd.f32 %v261, %v199
      %v263 = vadd.f32 %v262, %v200
      %v264 = vadd.f32 %v263, %v201
      %v265 = vadd.f32 %v264, %v202
      %266 = vadd.xlane.f32.xlu0 %v265
      %v267 = vpop.xlane.xlu0 %266
      %v268 = vadd.f32 %v203, %v204
      %v269 = vadd.f32 %v268, %v205
      %v270 = vadd.f32 %v269, %v206
      %v271 = vadd.f32 %v270, %v207
      %v272 = vadd.f32 %v271, %v208
      %v273 = vadd.f32 %v272, %v209
      %v274 = vadd.f32 %v273, %v210
      %v275 = vadd.f32 %v274, %v211
      %v276 = vadd.f32 %v275, %v212
      %v277 = vadd.f32 %v276, %v213
      %v278 = vadd.f32 %v277, %v214
      %v279 = vadd.f32 %v278, %v215
      %v280 = vadd.f32 %v279, %v216
      %v281 = vadd.f32 %v280, %v217
      %v282 = vadd.f32 %v281, %v218
      %v283 = vadd.f32 %v282, %v219
      %v284 = vadd.f32 %v283, %v220
      %v285 = vadd.f32 %v284, %v221
      %v286 = vadd.f32 %v285, %v222
      %v287 = vadd.f32 %v286, %v223
      %v288 = vadd.f32 %v287, %v224
      %v289 = vadd.f32 %v288, %v225
      %v290 = vadd.f32 %v289, %v226
      %v291 = vadd.f32 %v290, %v227
      %v292 = vadd.f32 %v291, %v228
      %v293 = vadd.f32 %v292, %v229
      %v294 = vadd.f32 %v293, %v230
      %v295 = vadd.f32 %v294, %v231
      %v296 = vadd.f32 %v295, %v232
      %v297 = vadd.f32 %v296, %v233
      %v298 = vadd.f32 %v297, %v234
      %299 = vadd.xlane.f32.xlu0 %v298
      %v300 = vpop.xlane.xlu0 %299
      %v301 = vmul.f32 %v267, 0.00024414063
      %v302 = vmul.f32 %v300, 0.00024414063
      %v303 = vld [vmem:[%s1] sm:$0xff]
      %v304 = vld [vmem:[%s1 + $0x8] sm:$0xff]
      %v305 = vld [vmem:[%s2] sm:$0xff]
      %v306 = vld [vmem:[%s2 + $0x8] sm:$0xff]
      %v307 = vmul.f32 %v301, %v303
      %v308 = vmul.f32 %v302, %v304
      %vm309 = vcmask 64512
      %v310 = vsel %vm309, %v307, 0.0
      %v311 = vsel %vm309, %v308, 0.0
      %v312 = vadd.f32 %v310, %v311
      %v313 = vrot.slane %v312, 4
      %v314 = vadd.f32 %v312, %v313
      %v315 = vrot.slane %v314, 2
      %v316 = vadd.f32 %v314, %v315
      %v317 = vrot.slane %v316, 1
      %v318 = vadd.f32 %v316, %v317
      %v319 = vmax.f32 %v318, 0.0
      %v320 = vmul.f32 %v319, %v305
      %v321 = vmul.f32 %v319, %v306
      %v322 = vsel %vm309, %v320, 0.0
      %323 = vadd.xlane.f32.xlu0 %v322
      %v324 = vpop.xlane.xlu0 %323
      %v325 = vsel %vm309, %v321, 0.0
      %326 = vadd.xlane.f32.xlu0 %v325
      %v327 = vpop.xlane.xlu0 %326
      %v328 = vxor.u32 %v324, 2147483648
      %v329 = vxor.u32 %v327, 2147483648
      %v330 = vmul.f32 %v328, 1.442695
      %v331 = vpow.pop %v330
      %v332 = vmul.f32 %v329, 1.442695
      %v333 = vpow.pop %v332
      %v334 = vadd.f32 %v331, 1.0
      %v335 = vadd.f32 %v333, 1.0
      %v336 = vrcp.pop %v334
      %v337 = vmul.f32 %v334, %v336
      %v338 = vsub.f32 1.0, %v337
      %v339 = vmul.f32 %v336, %v338
      %v340 = vadd.f32 %v336, %v339
      %vm341 = vweird.f32 %v334
      %vm342 = vweird.f32 %v336
      %vm343 = vmor %vm341, %vm342
      %v344 = vsel %vm343, %v336, %v340
      %v345 = vand.u32 2147483647, %v334
      %vm346 = vcmp.eq.f32.partialorder %v345, 8.507059e+37
      %v347 = vand.u32 %v334, 2147483648
      %v348 = vor.u32 1.1754944e-38, %v347
      %v349 = vsel %vm346, %v348, %v344
      %v350 = vmul.f32 1.0, %v349
      %v351 = vrcp.pop %v335
      %v352 = vmul.f32 %v335, %v351
      %v353 = vsub.f32 1.0, %v352
      %v354 = vmul.f32 %v351, %v353
      %v355 = vadd.f32 %v351, %v354
      %vm356 = vweird.f32 %v335
      %vm357 = vweird.f32 %v351
      %vm358 = vmor %vm356, %vm357
      %v359 = vsel %vm358, %v351, %v355
      %v360 = vand.u32 2147483647, %v335
      %vm361 = vcmp.eq.f32.partialorder %v360, 8.507059e+37
      %v362 = vand.u32 %v335, 2147483648
      %v363 = vor.u32 1.1754944e-38, %v362
      %v364 = vsel %vm361, %v363, %v359
      %v365 = vmul.f32 1.0, %v364
      %v366 = vmul.f32 %v171, %v350
      %v367 = vmul.f32 %v172, %v350
      %v368 = vmul.f32 %v173, %v350
      %v369 = vmul.f32 %v174, %v350
      %v370 = vmul.f32 %v175, %v350
      %v371 = vmul.f32 %v176, %v350
      %v372 = vmul.f32 %v177, %v350
      %v373 = vmul.f32 %v178, %v350
      %v374 = vmul.f32 %v179, %v350
      %v375 = vmul.f32 %v180, %v350
      %v376 = vmul.f32 %v181, %v350
      %v377 = vmul.f32 %v182, %v350
      %v378 = vmul.f32 %v183, %v350
      %v379 = vmul.f32 %v184, %v350
      %v380 = vmul.f32 %v185, %v350
      %v381 = vmul.f32 %v186, %v350
      %v382 = vmul.f32 %v187, %v350
      %v383 = vmul.f32 %v188, %v350
      %v384 = vmul.f32 %v189, %v350
      %v385 = vmul.f32 %v190, %v350
      %v386 = vmul.f32 %v191, %v350
      %v387 = vmul.f32 %v192, %v350
      %v388 = vmul.f32 %v193, %v350
      %v389 = vmul.f32 %v194, %v350
      %v390 = vmul.f32 %v195, %v350
      %v391 = vmul.f32 %v196, %v350
      %v392 = vmul.f32 %v197, %v350
      %v393 = vmul.f32 %v198, %v350
      %v394 = vmul.f32 %v199, %v350
      %v395 = vmul.f32 %v200, %v350
      %v396 = vmul.f32 %v201, %v350
      %v397 = vmul.f32 %v202, %v350
      %v398 = vmul.f32 %v203, %v365
      %v399 = vmul.f32 %v204, %v365
      %v400 = vmul.f32 %v205, %v365
      %v401 = vmul.f32 %v206, %v365
      %v402 = vmul.f32 %v207, %v365
      %v403 = vmul.f32 %v208, %v365
      %v404 = vmul.f32 %v209, %v365
      %v405 = vmul.f32 %v210, %v365
      %v406 = vmul.f32 %v211, %v365
      %v407 = vmul.f32 %v212, %v365
      %v408 = vmul.f32 %v213, %v365
      %v409 = vmul.f32 %v214, %v365
      %v410 = vmul.f32 %v215, %v365
      %v411 = vmul.f32 %v216, %v365
      %v412 = vmul.f32 %v217, %v365
      %v413 = vmul.f32 %v218, %v365
      %v414 = vmul.f32 %v219, %v365
      %v415 = vmul.f32 %v220, %v365
      %v416 = vmul.f32 %v221, %v365
      %v417 = vmul.f32 %v222, %v365
      %v418 = vmul.f32 %v223, %v365
      %v419 = vmul.f32 %v224, %v365
      %v420 = vmul.f32 %v225, %v365
      %v421 = vmul.f32 %v226, %v365
      %v422 = vmul.f32 %v227, %v365
      %v423 = vmul.f32 %v228, %v365
      %v424 = vmul.f32 %v229, %v365
      %v425 = vmul.f32 %v230, %v365
      %v426 = vmul.f32 %v231, %v365
      %v427 = vmul.f32 %v232, %v365
      %v428 = vmul.f32 %v233, %v365
      %v429 = vmul.f32 %v234, %v365
      %430 = vst [vmem:[%s170] sm:$0xff] %v366
      %431 = vst [vmem:[%s170 + $0x8] sm:$0xff] %v367
      %432 = vst [vmem:[%s170 + $0x10] sm:$0xff] %v368
      %433 = vst [vmem:[%s170 + $0x18] sm:$0xff] %v369
      %434 = vst [vmem:[%s170 + $0x20] sm:$0xff] %v370
      %435 = vst [vmem:[%s170 + $0x28] sm:$0xff] %v371
      %436 = vst [vmem:[%s170 + $0x30] sm:$0xff] %v372
      %437 = vst [vmem:[%s170 + $0x38] sm:$0xff] %v373
      %438 = vst [vmem:[%s170 + $0x40] sm:$0xff] %v374
      %439 = vst [vmem:[%s170 + $0x48] sm:$0xff] %v375
      %440 = vst [vmem:[%s170 + $0x50] sm:$0xff] %v376
      %441 = vst [vmem:[%s170 + $0x58] sm:$0xff] %v377
      %442 = vst [vmem:[%s170 + $0x60] sm:$0xff] %v378
      %443 = vst [vmem:[%s170 + $0x68] sm:$0xff] %v379
      %444 = vst [vmem:[%s170 + $0x70] sm:$0xff] %v380
      %445 = vst [vmem:[%s170 + $0x78] sm:$0xff] %v381
      %446 = vst [vmem:[%s170 + $0x80] sm:$0xff] %v382
      %447 = vst [vmem:[%s170 + $0x88] sm:$0xff] %v383
      %448 = vst [vmem:[%s170 + $0x90] sm:$0xff] %v384
      %449 = vst [vmem:[%s170 + $0x98] sm:$0xff] %v385
      %450 = vst [vmem:[%s170 + $0xa0] sm:$0xff] %v386
      %451 = vst [vmem:[%s170 + $0xa8] sm:$0xff] %v387
      %452 = vst [vmem:[%s170 + $0xb0] sm:$0xff] %v388
      %453 = vst [vmem:[%s170 + $0xb8] sm:$0xff] %v389
      %454 = vst [vmem:[%s170 + $0xc0] sm:$0xff] %v390
      %455 = vst [vmem:[%s170 + $0xc8] sm:$0xff] %v391
      %456 = vst [vmem:[%s170 + $0xd0] sm:$0xff] %v392
      %457 = vst [vmem:[%s170 + $0xd8] sm:$0xff] %v393
      %458 = vst [vmem:[%s170 + $0xe0] sm:$0xff] %v394
      %459 = vst [vmem:[%s170 + $0xe8] sm:$0xff] %v395
      %460 = vst [vmem:[%s170 + $0xf0] sm:$0xff] %v396
      %461 = vst [vmem:[%s170 + $0xf8] sm:$0xff] %v397
      %462 = vst [vmem:[%s170 + $0x100] sm:$0xff] %v398
      %463 = vst [vmem:[%s170 + $0x108] sm:$0xff] %v399
      %464 = vst [vmem:[%s170 + $0x110] sm:$0xff] %v400
      %465 = vst [vmem:[%s170 + $0x118] sm:$0xff] %v401
      %466 = vst [vmem:[%s170 + $0x120] sm:$0xff] %v402
      %467 = vst [vmem:[%s170 + $0x128] sm:$0xff] %v403
      %468 = vst [vmem:[%s170 + $0x130] sm:$0xff] %v404
      %469 = vst [vmem:[%s170 + $0x138] sm:$0xff] %v405
      %470 = vst [vmem:[%s170 + $0x140] sm:$0xff] %v406
      %471 = vst [vmem:[%s170 + $0x148] sm:$0xff] %v407
      %472 = vst [vmem:[%s170 + $0x150] sm:$0xff] %v408
      %473 = vst [vmem:[%s170 + $0x158] sm:$0xff] %v409
      %474 = vst [vmem:[%s170 + $0x160] sm:$0xff] %v410
      %475 = vst [vmem:[%s170 + $0x168] sm:$0xff] %v411
      %476 = vst [vmem:[%s170 + $0x170] sm:$0xff] %v412
      %477 = vst [vmem:[%s170 + $0x178] sm:$0xff] %v413
      %478 = vst [vmem:[%s170 + $0x180] sm:$0xff] %v414
      %479 = vst [vmem:[%s170 + $0x188] sm:$0xff] %v415
      %480 = vst [vmem:[%s170 + $0x190] sm:$0xff] %v416
      %481 = vst [vmem:[%s170 + $0x198] sm:$0xff] %v417
      %482 = vst [vmem:[%s170 + $0x1a0] sm:$0xff] %v418
      %483 = vst [vmem:[%s170 + $0x1a8] sm:$0xff] %v419
      %484 = vst [vmem:[%s170 + $0x1b0] sm:$0xff] %v420
      %485 = vst [vmem:[%s170 + $0x1b8] sm:$0xff] %v421
      %486 = vst [vmem:[%s170 + $0x1c0] sm:$0xff] %v422
      %487 = vst [vmem:[%s170 + $0x1c8] sm:$0xff] %v423
      %488 = vst [vmem:[%s170 + $0x1d0] sm:$0xff] %v424
      %489 = vst [vmem:[%s170 + $0x1d8] sm:$0xff] %v425
      %490 = vst [vmem:[%s170 + $0x1e0] sm:$0xff] %v426
      %491 = vst [vmem:[%s170 + $0x1e8] sm:$0xff] %v427
      %492 = vst [vmem:[%s170 + $0x1f0] sm:$0xff] %v428
      %493 = vst [vmem:[%s170 + $0x1f8] sm:$0xff] %v429
      %p494 = scmp.lt.s32.totalorder %s14, 1
      %s495 = scalar_select %p494, %s14, 1
      %s496 = smul.addr %s495, 64
      %s497 = smul.addr %s496, 8
      %s498 = scalar_lea.vmem %s3, %s497
      // Predicated region
      $region33: #{att_module_pallas.1} parent=31 // pred_check
        %p499 = pneg %p100
      $region34: #{att_module_pallas.1} parent=31 // pred_check_branch
        %501 = sbr.rel (%p499) target = $region36
      $region35: #{att_module_pallas.1} parent=31 // pred_region
        _
      $region36: #{att_module_pallas.1} parent=31 // pred_fallthru
        _
    $region32: #{att_module_pallas.1} parent=5 // pred_fallthru
      _
    %p502 = scmp.le.s32.totalorder 2, %s9
    // Predicated region
    $region37: #{att_module_pallas.1} parent=5 // pred_check
      %p503 = pneg %p502
    $region38: #{att_module_pallas.1} parent=5 // pred_check_branch
      %505 = sbr.rel (%p503) target = $region40
    $region39: #{att_module_pallas.1} parent=5 // pred_region
      %s506 = ssub.s32 %s9, 2
      // Predicated region
      $region41: #{att_module_pallas.1} parent=39 // pred_check
        %p507 = pneg %p106
      $region42: #{att_module_pallas.1} parent=39 // pred_check_branch
        %509 = sbr.rel (%p507) target = $region44
      $region43: #{att_module_pallas.1} parent=39 // pred_region
        %p510 = scmp.lt.s32.totalorder %s15, 1
        %s511 = scalar_select %p510, %s15, 1
        %s512 = smul.addr %s511, 64
        %s513 = smul.addr %s512, 8
        %s514 = scalar_lea.vmem %s3, %s513
      $region44: #{att_module_pallas.1} parent=39 // pred_fallthru
        _
    $region40: #{att_module_pallas.1} parent=5 // pred_fallthru
      _
  $region6: #{att_module_pallas.1} parent=0 // loop_footer
    %s13 = sadd.s32 1, %s9
  $region7: #{att_module_pallas.1} parent=0 // loop_footer_branch
    %8 = sbr.rel target = $region3
  $region8: #{att_module_pallas.1} parent=0 // loop_exit
    _

</llo_original>
